<compile_context>
chip_gen: v7x
topology: tpu7x:2x2x1
jax: 0.10.0
libtpu: 0.0.40
codegen_flags: <defaults>
</compile_context>

<pallas_src>
import functools
from typing import NamedTuple, Optional, Any

import jax
import jax.numpy as jnp
from jax import lax
from jax.experimental import pallas as pl
from jax.experimental.pallas import tpu as pltpu


def _round_up(x, m):
    return ((x + m - 1) // m) * m


def _pad_2d(a, rows, cols):
    pr, pc = rows - a.shape[0], cols - a.shape[1]
    if pr == 0 and pc == 0:
        return a
    return jnp.pad(a, ((0, pr), (0, pc)))


# ----------------------------------------------------------------------------
# Kernel 1: LoRA down-projection  u = x @ A^T   (tiny: r << 128)
# Grid (M tiles, K tiles); output block (tm, r) stays resident across K and is
# accumulated in f32 directly.
# ----------------------------------------------------------------------------
def _lora_down_kernel(x_ref, a_ref, u_ref):
    @pl.when(pl.program_id(1) == 0)
    def _():
        u_ref[...] = jnp.zeros_like(u_ref)

    nt = (((1,), (1,)), ((), ()))  # contract last dim of both operands ("NT")
    u_ref[...] += lax.dot_general(
        x_ref[...], a_ref[...], nt, preferred_element_type=jnp.float32)


# ----------------------------------------------------------------------------
# Kernel 2: main fused linear  out = x @ W^T + bias + (u @ B^T) * scaling
# Grid (M tiles, N tiles, K tiles), K last and "arbitrary".  The LoRA
# up-projection, scaling, bias and dtype cast happen only in the K epilogue.
# ----------------------------------------------------------------------------
def _lora_linear_kernel(*refs, scaling, has_bias):
    # refs layout:
    #   with bias:    x, W, bias, u, lora_B, out, acc_scratch
    #   without bias: x, W,       u, lora_B, out, acc_scratch
    if has_bias:
        x_ref, w_ref, b_ref, u_ref, lb_ref, o_ref, acc_ref = refs
    else:
        x_ref, w_ref, u_ref, lb_ref, o_ref, acc_ref = refs
        b_ref = None

    k = pl.program_id(2)

    @pl.when(k == 0)
    def _():
        acc_ref[...] = jnp.zeros_like(acc_ref)

    nt = (((1,), (1,)), ((), ()))
    acc_ref[...] += lax.dot_general(
        x_ref[...], w_ref[...], nt, preferred_element_type=jnp.float32)

    @pl.when(k == pl.num_programs(2) - 1)
    def _():
        lora = lax.dot_general(
            u_ref[...], lb_ref[...], nt, preferred_element_type=jnp.float32)
        out = acc_ref[...] + lora * scaling
        if has_bias:
            out = out + b_ref[...].astype(jnp.float32)
        o_ref[...] = out.astype(o_ref.dtype)


# ----------------------------------------------------------------------------
# One-time parameter preparation (padding + dtype casting done at "model init",
# not on every forward call).
# ----------------------------------------------------------------------------
class LoRALinearParams(NamedTuple):
    weight: jax.Array            # (n_pad, k_pad), compute dtype
    bias: Optional[jax.Array]    # (1, n_pad) f32, or None
    lora_A: jax.Array            # (r, k_pad), compute dtype
    lora_B: jax.Array            # (n_pad, r), f32 (tiny; kept full precision)
    scaling: float
    out_features: int
    in_features: int
    r: int
    n_pad: int
    k_pad: int
    tn: int
    tk: int
    compute_dtype: Any


def prepare_lora_linear_params(weight, bias, lora_A, lora_B, *, lora_alpha=32,
                               tn=512, tk=1024, compute_dtype=None):
    """Pad N/K to tile multiples and cast once.  compute_dtype=jnp.bfloat16 feeds
    the MXU bf16 (recommended for production); None keeps the weight dtype."""
    assert tn % 128 == 0 and tk % 128 == 0, "tn/tk must be multiples of 128"
    out_features, in_features = weight.shape
    r = lora_A.shape[0]
    assert lora_A.shape == (r, in_features)
    assert lora_B.shape == (out_features, r)
    scaling = float(lora_alpha) / float(r)
    if compute_dtype is None:
        compute_dtype = weight.dtype

    tn_eff = min(tn, _round_up(out_features, 128))
    tk_eff = min(tk, _round_up(in_features, 128))
    n_pad = _round_up(out_features, tn_eff)
    k_pad = _round_up(in_features, tk_eff)

    w_p = _pad_2d(weight, n_pad, k_pad).astype(compute_dtype)
    a_p = _pad_2d(lora_A, r, k_pad).astype(compute_dtype)
    b_p = _pad_2d(lora_B, n_pad, r).astype(jnp.float32)
    bias_p = None
    if bias is not None:
        bias_p = _pad_2d(bias.reshape(1, out_features).astype(jnp.float32), 1, n_pad)

    return LoRALinearParams(w_p, bias_p, a_p, b_p, scaling, out_features,
                            in_features, r, n_pad, k_pad, tn_eff, tk_eff,
                            compute_dtype)


# ----------------------------------------------------------------------------
# Forward (hot path): pads only the activation rows, runs the two kernels.
# ----------------------------------------------------------------------------
def lora_linear_apply(x, params: LoRALinearParams, *, tm=256):
    assert tm % 16 == 0, "tm must be a multiple of 16 (bf16 sublane packing)"
    orig_shape = x.shape
    x2d = x.reshape(-1, params.in_features)
    M = x2d.shape[0]
    r = params.r
    n_pad, k_pad = params.n_pad, params.k_pad
    tk_eff = params.tk
    tn_eff = params.tn

    tm_eff = min(tm, _round_up(M, 16))
    m_pad = _round_up(M, tm_eff)

    # v7x megacore: if the row axis collapses to one tile (decode-style call),
    # split the output-column axis so both TensorCores get a parallel tile.
    if m_pad // tm_eff == 1 and n_pad // tn_eff == 1 and tn_eff % 256 == 0:
        tn_eff //= 2

    x_p = _pad_2d(x2d, m_pad, k_pad).astype(params.compute_dtype)

    # --- LoRA down-projection (hoisted out of the main K loop) ----------------
    u = pl.pallas_call(
        _lora_down_kernel,
        out_shape=jax.ShapeDtypeStruct((m_pad, r), jnp.float32),
        grid_spec=pltpu.PrefetchScalarGridSpec(
            num_scalar_prefetch=0,
            grid=(m_pad // tm_eff, k_pad // tk_eff),
            in_specs=[
                pl.BlockSpec((tm_eff, tk_eff), lambda i, k: (i, k)),
                pl.BlockSpec((r, tk_eff), lambda i, k: (0, k)),
            ],
            out_specs=pl.BlockSpec((tm_eff, r), lambda i, k: (i, 0)),
        ),
        compiler_params=pltpu.CompilerParams(
            dimension_semantics=("parallel", "arbitrary")),
    )(x_p, params.lora_A)

    # --- Main fused linear ----------------------------------------------------
    has_bias = params.bias is not None
    operands = [x_p, params.weight]
    in_specs = [
        pl.BlockSpec((tm_eff, tk_eff), lambda i, j, k: (i, k)),   # x rows / K tile
        pl.BlockSpec((tn_eff, tk_eff), lambda i, j, k: (j, k)),   # W (out, in) tile
    ]
    if has_bias:
        operands.append(params.bias)
        in_specs.append(pl.BlockSpec((1, tn_eff), lambda i, j, k: (0, j)))
    operands += [u, params.lora_B]
    in_specs += [
        pl.BlockSpec((tm_eff, r), lambda i, j, k: (i, 0)),        # u = x @ A^T
        pl.BlockSpec((tn_eff, r), lambda i, j, k: (j, 0)),        # lora_B (out, r)
    ]

    kernel = functools.partial(_lora_linear_kernel,
                               scaling=params.scaling, has_bias=has_bias)

    itemsize = jnp.dtype(params.compute_dtype).itemsize
    out_itemsize = jnp.dtype(x.dtype).itemsize
    cost = pl.CostEstimate(
        flops=2 * m_pad * k_pad * n_pad + 2 * m_pad * r * n_pad,
        transcendentals=0,
        bytes_accessed=(m_pad * k_pad + n_pad * k_pad) * itemsize
                       + (m_pad * r + n_pad * r + n_pad) * 4
                       + m_pad * n_pad * out_itemsize)

    # Double-buffered VMEM footprint estimate; raise the scoped limit only if needed
    # (kept well below v7x's 64 MiB physical VMEM).
    blk_bytes = ((tm_eff * tk_eff + tn_eff * tk_eff) * itemsize
                 + (tm_eff * r + tn_eff * r + tn_eff) * 4
                 + tm_eff * tn_eff * out_itemsize)
    vmem_est = 2 * blk_bytes + tm_eff * tn_eff * 4
    compiler_kwargs = dict(
        dimension_semantics=("parallel", "parallel", "arbitrary"))
    if vmem_est > 12 * 1024 * 1024:
        compiler_kwargs["vmem_limit_bytes"] = min(40 * 1024 * 1024,
                                                  vmem_est + (8 << 20))

    out2d = pl.pallas_call(
        kernel,
        out_shape=jax.ShapeDtypeStruct((m_pad, n_pad), x.dtype),
        grid_spec=pltpu.PrefetchScalarGridSpec(
            num_scalar_prefetch=0,
            grid=(m_pad // tm_eff, n_pad // tn_eff, k_pad // tk_eff),
            in_specs=in_specs,
            out_specs=pl.BlockSpec((tm_eff, tn_eff), lambda i, j, k: (i, j)),
            scratch_shapes=[pltpu.VMEM((tm_eff, tn_eff), jnp.float32)],
        ),
        compiler_params=pltpu.CompilerParams(**compiler_kwargs),
        cost_estimate=cost,
    )(*operands)

    out2d = out2d[:M, :params.out_features]
    return out2d.reshape(*orig_shape[:-1], params.out_features)


def lora_linear(x, weight, bias, lora_A, lora_B, *, lora_alpha=32,
                tm=256, tn=512, tk=1024, compute_dtype=None):
    """Convenience wrapper: prepare (pad/cast) + apply.  In a real model, call
    prepare_lora_linear_params once at init and lora_linear_apply per step."""
    params = prepare_lora_linear_params(
        weight, bias, lora_A, lora_B, lora_alpha=lora_alpha, tn=tn, tk=tk,
        compute_dtype=compute_dtype)
    return lora_linear_apply(x, params, tm=tm)


def lora_linear_ref(x, weight, bias, lora_A, lora_B, *, lora_alpha=32):
    r = lora_A.shape[0]
    scaling = float(lora_alpha) / float(r)
    result = jnp.einsum("...i,oi->...o", x, weight)
    if bias is not None:
        result = result + bias
    lora_update = jnp.einsum(
        "...r,or->...o", jnp.einsum("...i,ri->...r", x, lora_A), lora_B) * scaling
    return result + lora_update


if __name__ == "__main__":
    key = jax.random.PRNGKey(0)
    (k_x, k_w, k_b, k_a, k_lb,
     k_x2, k_w2, k_b2, k_a2, k_lb2,
     k_x3, k_w3, k_b3, k_a3, k_lb3) = jax.random.split(key, 15)

    # --- Test 1: small shapes consistent with the module (batch=2, seq=8). ---
    batch, seq = 2, 8
    in_f, out_f, r, alpha = 32, 64, 8, 32
    x = jax.random.normal(k_x, (batch, seq, in_f), dtype=jnp.float32)
    w = jax.random.normal(k_w, (out_f, in_f), dtype=jnp.float32) * 0.05
    b = jax.random.normal(k_b, (out_f,), dtype=jnp.float32) * 0.1
    A = jax.random.normal(k_a, (r, in_f), dtype=jnp.float32) * 0.01
    B = jax.random.normal(k_lb, (out_f, r), dtype=jnp.float32) * 0.01

    out = jax.block_until_ready(lora_linear(x, w, b, A, B, lora_alpha=alpha))
    ref = lora_linear_ref(x, w, b, A, B, lora_alpha=alpha)
    assert out.shape == (batch, seq, out_f)
    assert jnp.allclose(out, ref, atol=1e-4, rtol=1e-4), \
        f"max abs err {jnp.max(jnp.abs(out - ref))}"

    # --- Test 1b: bias=None path (no bias operand is passed to the kernel). ---
    out_nb = jax.block_until_ready(lora_linear(x, w, None, A, B, lora_alpha=alpha))
    ref_nb = lora_linear_ref(x, w, None, A, B, lora_alpha=alpha)
    assert jnp.allclose(out_nb, ref_nb, atol=1e-4, rtol=1e-4)

    # --- Test 2: ragged shapes exercising all three grid axes + padding/accum. ---
    x2 = jax.random.normal(k_x2, (3, 50, 300), dtype=jnp.float32)
    w2 = jax.random.normal(k_w2, (300, 300), dtype=jnp.float32) * 0.02
    b2 = jax.random.normal(k_b2, (300,), dtype=jnp.float32) * 0.1
    A2 = jax.random.normal(k_a2, (r, 300), dtype=jnp.float32) * 0.01
    B2 = jax.random.normal(k_lb2, (300, r), dtype=jnp.float32) * 0.01
    out2 = jax.block_until_ready(
        lora_linear(x2, w2, b2, A2, B2, lora_alpha=alpha, tm=64, tn=128, tk=128))
    ref2 = lora_linear_ref(x2, w2, b2, A2, B2, lora_alpha=alpha)
    assert out2.shape == (3, 50, 300)
    assert jnp.allclose(out2, ref2, atol=1e-3, rtol=1e-3), \
        f"max abs err {jnp.max(jnp.abs(out2 - ref2))}"

    # --- Test 3: bf16 MXU feed (production path recommended by the review). ---
    params_bf16 = prepare_lora_linear_params(
        w, b, A, B, lora_alpha=alpha, compute_dtype=jnp.bfloat16)
    out_bf16 = jax.block_until_ready(lora_linear_apply(x, params_bf16))
    assert jnp.allclose(out_bf16, ref, atol=5e-2, rtol=5e-2), \
        f"bf16 max abs err {jnp.max(jnp.abs(out_bf16 - ref))}"

    # --- Test 4: decode-style call (single row tile) exercising the v7x split
    #     of the output-column axis into two parallel tiles. ---
    in3, out3 = 256, 512
    x3 = jax.random.normal(k_x3, (2, 8, in3), dtype=jnp.float32)
    w3 = jax.random.normal(k_w3, (out3, in3), dtype=jnp.float32) * 0.02
    b3 = jax.random.normal(k_b3, (out3,), dtype=jnp.float32) * 0.1
    A3 = jax.random.normal(k_a3, (r, in3), dtype=jnp.float32) * 0.01
    B3 = jax.random.normal(k_lb3, (out3, r), dtype=jnp.float32) * 0.01
    out3v = jax.block_until_ready(lora_linear(x3, w3, b3, A3, B3, lora_alpha=alpha))
    ref3 = lora_linear_ref(x3, w3, b3, A3, B3, lora_alpha=alpha)
    assert jnp.allclose(out3v, ref3, atol=1e-3, rtol=1e-3), \
        f"max abs err {jnp.max(jnp.abs(out3v - ref3))}"

    print("KERNEL_OK")
</pallas_src>

<mosaic_0001>
module attributes {stable_mosaic.version = 11 : i64} {
  func.func @_lora_down_kernel(%arg0: i32, %arg1: i32, %arg2: memref<16x128xf32, #tpu.memory_space<vmem>>, %arg3: memref<8x128xf32, #tpu.memory_space<vmem>>, %arg4: memref<16x8xf32, #tpu.memory_space<vmem>>) attributes {dimension_semantics = [#tpu.dimension_semantics<parallel>, #tpu.dimension_semantics<arbitrary>], iteration_bounds = array<i64: 1, 1>, scalar_prefetch = 0 : i64, scratch_operands = 0 : i64, tpu.core_type = #tpu.core_type<tc>, window_params = [{transform_indices = @transform_0, window_bounds = array<i64: 16, 128>}, {transform_indices = @transform_1, window_bounds = array<i64: 8, 128>}, {transform_indices = @transform_2, window_bounds = array<i64: 16, 8>}]} {
    %c0_i32 = arith.constant 0 : i32
    %0 = arith.cmpi eq, %arg1, %c0_i32 : i32
    %1 = arith.extui %0 : i1 to i32
    %c0_i32_0 = arith.constant 0 : i32
    %2 = arith.cmpi ne, %1, %c0_i32_0 : i32
    scf.if %2 {
      %cst_8 = arith.constant 0.000000e+00 : f32
      %9 = vector.broadcast %cst_8 : f32 to vector<16x8xf32>
      %c0_9 = arith.constant 0 : index
      %c0_10 = arith.constant 0 : index
      %10 = vector.load %arg4[%c0_9, %c0_10] : memref<16x8xf32, #tpu.memory_space<vmem>>, vector<16x8xf32>
      tpu.vector_store %arg4[%c0_9, %c0_10], %9 {strides = array<i32>} : memref<16x8xf32, #tpu.memory_space<vmem>>, vector<16x8xf32>,
    } else {
    }
    %c0 = arith.constant 0 : index
    %c0_1 = arith.constant 0 : index
    %3 = vector.load %arg4[%c0, %c0_1] : memref<16x8xf32, #tpu.memory_space<vmem>>, vector<16x8xf32>
    %c0_2 = arith.constant 0 : index
    %c0_3 = arith.constant 0 : index
    %4 = vector.load %arg2[%c0_2, %c0_3] : memref<16x128xf32, #tpu.memory_space<vmem>>, vector<16x128xf32>
    %c0_4 = arith.constant 0 : index
    %c0_5 = arith.constant 0 : index
    %5 = vector.load %arg3[%c0_4, %c0_5] : memref<8x128xf32, #tpu.memory_space<vmem>>, vector<8x128xf32>
    %cst = arith.constant dense<0.000000e+00> : vector<16x8xf32>
    %6 = tpu.matmul %4, %5, %cst {dimension_numbers = #tpu.dot_dimension_numbers<[1], [1], [0], [0], [0, 0, 1, 0], [], []>} : vector<16x128xf32>, vector<8x128xf32>, vector<16x8xf32> -> vector<16x8xf32>
    %7 = arith.addf %3, %6 : vector<16x8xf32>
    %c0_6 = arith.constant 0 : index
    %c0_7 = arith.constant 0 : index
    %8 = vector.load %arg4[%c0_6, %c0_7] : memref<16x8xf32, #tpu.memory_space<vmem>>, vector<16x8xf32>
    tpu.vector_store %arg4[%c0_6, %c0_7], %7 {strides = array<i32>} : memref<16x8xf32, #tpu.memory_space<vmem>>, vector<16x8xf32>,
    return
  }
  func.func @transform_0(%arg0: i32, %arg1: i32) -> (i32, i32) {
    %c0_i32 = arith.constant 0 : i32
    return %arg0, %arg1 : i32, i32
  }
  func.func @transform_1(%arg0: i32, %arg1: i32) -> (i32, i32) {
    %c0_i32 = arith.constant 0 : i32
    %c0_i32_0 = arith.constant 0 : i32
    return %c0_i32, %arg1 : i32, i32
  }
  func.func @transform_2(%arg0: i32, %arg1: i32) -> (i32, i32) {
    %c0_i32 = arith.constant 0 : i32
    %c0_i32_0 = arith.constant 0 : i32
    return %arg0, %c0_i32 : i32, i32
  }
}

</mosaic_0001>

<llo_original>
// kernel: tpu_custom_call.1
$region0: #{tpu_custom_call.1}
  #allocation0 [shape = 'u32[]', space=smem, size = 0x4, offset = 0x4, fixed_abs, tag = 'smem constant byte address 0x4 - core index']
  #allocation1 [shape = 'u32[144,128]{1,0:T(1,128)}', space=vmem, size = 0x12000, scoped, tag = 'internal scratch']
  %s0 = inlined_call_operand.hbm [shape: f32[16,128], index: 0, kind: input, shape index: {}]
  %s1 = inlined_call_operand.hbm [shape: f32[8,128], index: 1, kind: input, shape index: {}]
  %s2 = inlined_call_operand.vmem [shape: f32[16,8], index: 2, kind: output, shape index: {}]
  %s3 = sld [smem:[#allocation0]]
  $region30: #{tpu_custom_call.1} parent=0
    _
  %s5 = ssub.s32 1, %s3
  %s6 = scalar_select 0, %s5, %s3
  $region1: #{tpu_custom_call.1} parent=0
    #allocation2 [shape = 'u8[8192]{0}', space=vmem, size = 0x2000, scoped, tag = 'input window, operand 0, single buffered']
    #allocation3 [shape = 's32[1]{0}', space=sflag, size = 0x4, scoped, tag = 'scoped memory for tpu_custom_call.1']
    #allocation4 [shape = 'u8[4096]{0}', space=vmem, size = 0x1000, scoped, tag = 'input window, operand 1, single buffered']
    #allocation5 [shape = 's32[1]{0}', space=sflag, size = 0x4, scoped, tag = 'scoped memory for tpu_custom_call.1']
    %7 = vsyncpa [#allocation3], 0
    %8 = vsyncpa [#allocation5], 0
    // Predicated region
    $region2: #{tpu_custom_call.1} parent=1 // pred_check
      _
    $region3: #{tpu_custom_call.1} parent=1 // pred_check_branch
      %10 = sbr.rel (0) target = $region5
    $region4: #{tpu_custom_call.1} parent=1 // pred_region
      %s12 = ssub.s32 256, 256
      %13 = vsyncadd [#allocation3], %s12
      %s14 = sshll.u32 [#allocation2], 4
      %s15 = int_to_ptr.vmem [resolvable:$true] %s14
      %20 = dma.hbm_to_vmem [thread:$0]  %s0, 256, %s15, [#allocation3], 128, 128, 8
    $region5: #{tpu_custom_call.1} parent=1 // pred_fallthru
      _
    // Predicated region
    $region6: #{tpu_custom_call.1} parent=1 // pred_check
      _
    $region7: #{tpu_custom_call.1} parent=1 // pred_check_branch
      %22 = sbr.rel (0) target = $region9
    $region8: #{tpu_custom_call.1} parent=1 // pred_region
      %s24 = ssub.s32 128, 128
      %25 = vsyncadd [#allocation5], %s24
      %s27 = sshll.u32 [#allocation4], 4
      %s28 = int_to_ptr.vmem [resolvable:$true] %s27
      %30 = dma.hbm_to_vmem [thread:$0]  %s1, 128, %s28, [#allocation5]
    $region9: #{tpu_custom_call.1} parent=1 // pred_fallthru
      _
    // Predicated region
    $region10: #{tpu_custom_call.1} parent=1 // pred_check
      _
    $region11: #{tpu_custom_call.1} parent=1 // pred_check_branch
      %32 = sbr.rel (0) target = $region13
    $region12: #{tpu_custom_call.1} parent=1 // pred_region
      %33 = dma.done [#allocation3], 256
    $region13: #{tpu_custom_call.1} parent=1 // pred_fallthru
      _
    // Predicated region
    $region14: #{tpu_custom_call.1} parent=1 // pred_check
      _
    $region15: #{tpu_custom_call.1} parent=1 // pred_check_branch
      %35 = sbr.rel (0) target = $region17
    $region16: #{tpu_custom_call.1} parent=1 // pred_region
      %36 = dma.done [#allocation5], 128
    $region17: #{tpu_custom_call.1} parent=1 // pred_fallthru
      _
    %p37 = scmp.eq.s32.totalorder 0, 0
    // Predicated region
    $region18: #{tpu_custom_call.1} parent=1 // pred_check
      %p38 = pneg %p37
    $region19: #{tpu_custom_call.1} parent=1 // pred_check_branch
      %40 = sbr.rel (%p38) target = $region21
    $region20: #{tpu_custom_call.1} parent=1 // pred_region
      %vm41 = vcmask 64512
      %42 = vst.msk [vmem:[%s2] sm:$0xff] %vm41, 0.0
      %43 = vst.msk [vmem:[%s2 + $0x8] sm:$0xff] %vm41, 0.0
    $region21: #{tpu_custom_call.1} parent=1 // pred_fallthru
      _
    %v44 = vld [vmem:[%s2] sm:$0xff]
    %v45 = vld [vmem:[%s2 + $0x8] sm:$0xff]
    %v46 = vld [vmem:[#allocation2] sm:$0xff]
    %v47 = vld [vmem:[#allocation2 + $0x8] sm:$0xff]
    %v48 = vld [vmem:[#allocation4] sm:$0xff]
    %49 = vmatprep.subr.mxu0 0.0
    %50 = vmatpush1.xpose.msra.mxu0 %v48
    %51 = vmatprep.subr.mxu0 0.0
    %52 = vmatpush1.xpose.msra.mxu0 0.0
    %53 = vmatprep.subr.mxu0 0.0
    %54 = vmatpush1.xpose.msra.mxu0 0.0
    %55 = vmatprep.subr.mxu0 0.0
    %56 = vmatpush1.xpose.msra.mxu0 0.0
    %57 = vmatprep.subr.mxu0 0.0
    %58 = vmatpush1.xpose.msra.mxu0 0.0
    %59 = vmatprep.subr.mxu0 0.0
    %60 = vmatpush1.xpose.msra.mxu0 0.0
    %61 = vmatprep.subr.mxu0 0.0
    %62 = vmatpush1.xpose.msra.mxu0 0.0
    %63 = vmatprep.subr.mxu0 0.0
    %64 = vmatpush1.xpose.msra.mxu0 0.0
    %65 = vmatprep.subr.mxu0 0.0
    %66 = vmatpush1.xpose.msra.mxu0 0.0
    %67 = vmatprep.subr.mxu0 0.0
    %68 = vmatpush1.xpose.msra.mxu0 0.0
    %69 = vmatprep.subr.mxu0 0.0
    %70 = vmatpush1.xpose.msra.mxu0 0.0
    %71 = vmatprep.subr.mxu0 0.0
    %72 = vmatpush1.xpose.msra.mxu0 0.0
    %73 = vmatprep.subr.mxu0 0.0
    %74 = vmatpush1.xpose.msra.mxu0 0.0
    %75 = vmatprep.subr.mxu0 0.0
    %76 = vmatpush1.xpose.msra.mxu0 0.0
    %77 = vmatprep.subr.mxu0 0.0
    %78 = vmatpush1.xpose.msra.mxu0 0.0
    %79 = vmatprep.subr.mxu0 0.0
    %80 = vmatpush1.xpose.msra.mxu0 0.0
    %81 = vmatprep.subr.mxu0 0.0
    %82 = vmatpush1.xpose.msra.mxu0 0.0
    %83 = vmatprep.subr.mxu0 0.0
    %84 = vmatpush1.xpose.msra.mxu0 0.0
    %85 = vmatprep.subr.mxu0 0.0
    %86 = vmatpush1.xpose.msra.mxu0 0.0
    %87 = vmatprep.subr.mxu0 0.0
    %88 = vmatpush1.xpose.msra.mxu0 0.0
    %89 = vmatprep.subr.mxu0 0.0
    %90 = vmatpush1.xpose.msra.mxu0 0.0
    %91 = vmatprep.subr.mxu0 0.0
    %92 = vmatpush1.xpose.msra.mxu0 0.0
    %93 = vmatprep.subr.mxu0 0.0
    %94 = vmatpush1.xpose.msra.mxu0 0.0
    %95 = vmatprep.subr.mxu0 0.0
    %96 = vmatpush1.xpose.msra.mxu0 0.0
    %97 = vmatprep.subr.mxu0 0.0
    %98 = vmatpush1.xpose.msra.mxu0 0.0
    %99 = vmatprep.subr.mxu0 0.0
    %100 = vmatpush1.xpose.msra.mxu0 0.0
    %101 = vmatprep.subr.mxu0 0.0
    %102 = vmatpush1.xpose.msra.mxu0 0.0
    %103 = vmatprep.subr.mxu0 0.0
    %104 = vmatpush1.xpose.msra.mxu0 0.0
    %105 = vmatprep.subr.mxu0 0.0
    %106 = vmatpush1.xpose.msra.mxu0 0.0
    %107 = vmatprep.subr.mxu0 0.0
    %108 = vmatpush1.xpose.msra.mxu0 0.0
    %109 = vmatprep.subr.mxu0 0.0
    %110 = vmatpush1.xpose.msra.mxu0 0.0
    %111 = vmatprep.subr.mxu0 0.0
    %112 = vmatpush1.xpose.msra.mxu0 0.0
    %113 = vmatprep.mubr.f32.mxu0 0.0
    %114 = vmatmul.mubr.f32.gmra.mrb[0].mxu0 %v46
    %v115 = vpop.f32.mrb[0].mxu0
    %v116 = vadd.f32 0.0, %v115
    %v117 = vpop.f32.mrb[0].mxu0
    %118 = vmatprep.mubr.f32.mxu0 0.0
    %119 = vmatmul.mubr.f32.gmra.mrb[0].mxu0 %v47
    %v120 = vpop.f32.mrb[0].mxu0
    %v121 = vadd.f32 0.0, %v120
    %v122 = vpop.f32.mrb[0].mxu0
    %123 = vdwg.mxu0
    %v124 = vadd.f32 %v44, %v116
    %v125 = vadd.f32 %v45, %v121
    %vm126 = vcmask 64512
    %127 = vst.msk [vmem:[%s2] sm:$0xff] %vm126, %v124
    %128 = vst.msk [vmem:[%s2 + $0x8] sm:$0xff] %vm126, %v125
    // Predicated region
    $region22: #{tpu_custom_call.1} parent=1 // pred_check
      _
    $region23: #{tpu_custom_call.1} parent=1 // pred_check_branch
      %130 = sbr.rel (0) target = $region25
    $region24: #{tpu_custom_call.1} parent=1 // pred_region
      _
    $region25: #{tpu_custom_call.1} parent=1 // pred_fallthru
      _
    // Predicated region
    $region26: #{tpu_custom_call.1} parent=1 // pred_check
      _
    $region27: #{tpu_custom_call.1} parent=1 // pred_check_branch
      %132 = sbr.rel (0) target = $region29
    $region28: #{tpu_custom_call.1} parent=1 // pred_region
      _
    $region29: #{tpu_custom_call.1} parent=1 // pred_fallthru
      _
    %133 = vsyncpa [#allocation3], 1
    %134 = vsyncpa [#allocation5], 1

</llo_original>
